<compile_context>
chip_gen: v5e
topology: v5e:2x2
jax: 0.10.0
libtpu: 0.0.40
codegen_flags: <defaults>
</compile_context>

<pallas_src>
import functools

import jax
import jax.numpy as jnp
from jax import lax
from jax.experimental import pallas as pl
from jax.experimental.pallas import tpu as pltpu

VISION_HIDDEN_SIZE = 384  # DeepPairwiseMeasure.vision_hidden_size
_LANE = 128
_SUBLANE = 8


def _round_up(x, m):
    return ((x + m - 1) // m) * m


# ---------------------------------------------------------------------------
# Kernel 1: streamed spatial sum (numerator of the global average pool).
#   x*_ref : (R, TILE_HW) tile of one image, R = B*C rows, original dtype
#   o*_ref : (R, 128) f32 partial sums (one (P, R, 128) output block per parallel
#            slice), resident across the reduce (last, "arbitrary") grid axis.
# Static args (via functools.partial): nk, n_full, tail, tile_hw.
# ---------------------------------------------------------------------------
def _spatial_sum_kernel(nk, n_full, tail, tile_hw,
                        x1_ref, x2_ref, x3_ref, o1_ref, o2_ref, o3_ref):
    p = pl.program_id(0)
    k = pl.program_id(1)
    t = p * nk + k                      # global HW-tile index (may overflow -> skipped)

    @pl.when(k == 0)
    def _():
        o1_ref[...] = jnp.zeros_like(o1_ref)
        o2_ref[...] = jnp.zeros_like(o2_ref)
        o3_ref[...] = jnp.zeros_like(o3_ref)

    n_chunks = tile_hw // _LANE

    def accum_full(x_ref, o_ref):
        # Per-chunk load+cast keeps vreg pressure at a few vregs (no tile-sized f32
        # temp); the single cross-lane reduce happens once in the epilogue kernel.
        def body(c, s):
            idx = pl.multiple_of(c * _LANE, _LANE)
            return s + x_ref[:, pl.ds(idx, _LANE)].astype(jnp.float32)

        s0 = jnp.zeros((x_ref.shape[0], _LANE), jnp.float32)
        s = lax.fori_loop(0, n_chunks, body, s0, unroll=min(8, n_chunks))
        o_ref[...] += s

    @pl.when(t < n_full)                # full (unmasked) tiles: the hot loop
    def _():
        accum_full(x1_ref, o1_ref)
        accum_full(x2_ref, o2_ref)
        accum_full(x3_ref, o3_ref)

    if tail > 0:
        # Ragged final HW tile: number of valid columns is known statically; mask
        # only the partial 128-lane chunk.  (Columns past HW in the edge block are
        # uninitialized VMEM, so they must be masked, never summed.)
        tail_chunks = tail // _LANE
        tail_rem = tail % _LANE

        def accum_tail(x_ref, o_ref):
            s = jnp.zeros((x_ref.shape[0], _LANE), jnp.float32)
            if tail_chunks > 0:
                def body(c, s):
                    idx = pl.multiple_of(c * _LANE, _LANE)
                    return s + x_ref[:, pl.ds(idx, _LANE)].astype(jnp.float32)
                s = lax.fori_loop(0, tail_chunks, body, s,
                                  unroll=min(8, tail_chunks))
            if tail_rem > 0:
                col = lax.broadcasted_iota(jnp.int32, (1, _LANE), 1)
                chunk = x_ref[:, pl.ds(tail_chunks * _LANE, _LANE)].astype(jnp.float32)
                s = s + jnp.where(col < tail_rem, chunk, 0.0)
            o_ref[...] += s

        @pl.when(t == n_full)
        def _():
            accum_tail(x1_ref, o1_ref)
            accum_tail(x2_ref, o2_ref)
            accum_tail(x3_ref, o3_ref)


# ---------------------------------------------------------------------------
# Kernel 2: O(B) epilogue — runs once on tiny operands.
#   pooled_ref : (3*Bp, C) spatial sums (rows: [img1 | img2 | ref], Bp = round_up(B,8))
# ---------------------------------------------------------------------------
def _epilogue_kernel(inv_hw, eps, batch,
                     a_ref,        # SMEM (1, 1) scalar log-scale `a`
                     pooled_ref,   # VMEM (3*Bp, C) spatial sums
                     w_ref,        # VMEM (C, HIDDEN) feature projection weight
                     gt_ref,       # VMEM (Bp, 1) ground truths (padded)
                     out_ref):     # VMEM (1, 1) mean BCE-with-logits loss
    # TODO(synk): self.model / get_image_features is abstract (NotImplementedError);
    # synthesized as global average pool over spatial + linear projection to 384.
    pooled = pooled_ref[...] * inv_hw                               # (3*Bp, C) means
    # Single MXU weight push shared by all three images.
    feats = jnp.dot(pooled, w_ref[...], preferred_element_type=jnp.float32)
    bp = feats.shape[0] // 3
    f1 = feats[0 * bp:1 * bp]                                       # sublane-aligned
    f2 = feats[1 * bp:2 * bp]
    fr = feats[2 * bp:3 * bp]

    def cosine_sim(x, y):
        # torch.nn.functional.cosine_similarity semantics: clamp each norm by eps.
        num = jnp.sum(x * y, axis=-1, keepdims=True)                # (Bp, 1)
        nx = jnp.maximum(jnp.sqrt(jnp.sum(x * x, axis=-1, keepdims=True)), eps)
        ny = jnp.maximum(jnp.sqrt(jnp.sum(y * y, axis=-1, keepdims=True)), eps)
        return num / (nx * ny)

    def neg_distance(x, y):
        # distance_function('cosine'): 1 - clamp(cos_sim, -0.1, 1); encode_scores negates.
        sim = jnp.clip(cosine_sim(x, y), -0.1, 1.0)
        return -(1.0 - sim)

    scores1 = neg_distance(f1, fr)                                  # (Bp, 1)
    scores2 = neg_distance(f2, fr)                                  # (Bp, 1)

    logits = jnp.exp(a_ref[0, 0]) * (scores1 - scores2)             # (Bp, 1)
    targets = jnp.round(gt_ref[...])                                # (Bp, 1)
    # Numerically-stable BCE with logits: max(x,0) - x*y + log1p(exp(-|x|))
    loss = (jnp.maximum(logits, 0.0)
            - logits * targets
            + jnp.log1p(jnp.exp(-jnp.abs(logits))))                 # (Bp, 1)

    row = lax.broadcasted_iota(jnp.int32, loss.shape, 0)
    loss = jnp.where(row < batch, loss, 0.0)                        # drop padded rows
    out_ref[...] = jnp.sum(loss, axis=0, keepdims=True) * (1.0 / batch)


def deep_pairwise_measure_forward(image1, image2, ref_image, ground_truths,
                                  w_feat, a_scalar):
    """Forward pass of DeepPairwiseMeasure (bce / cosine path)."""
    B, C, H, W = image1.shape
    HW = H * W
    R = B * C
    itemsize = jnp.dtype(image1.dtype).itemsize

    # Free reshapes only — no wrapper-side concatenate/pad of the big images.
    x1 = image1.reshape(R, HW)
    x2 = image2.reshape(R, HW)
    xr = ref_image.reshape(R, HW)

    # Tile sizing: ~4 MiB per input block -> 3 inputs x 2 buffers ~ 24 MiB of VMEM,
    # comfortably under v7x's 64 MiB physical cap while large enough (>= multi-MiB)
    # to amortize the ~0.35 us per-grid-step overhead on every generation.
    max_block_bytes = 4 * 1024 * 1024
    tile_hw = max(_LANE, (max_block_bytes // (R * itemsize)) // _LANE * _LANE)
    tile_hw = min(tile_hw, _round_up(HW, _LANE))
    n_full = HW // tile_hw                      # complete tiles
    tail = HW - n_full * tile_hw                # ragged columns (masked in-kernel)
    nt = n_full + (1 if tail else 0)            # total HW tiles
    p_par = 2 if nt >= 2 else 1                 # >=2 parallel blocks for v7x megacore
    nk = pl.cdiv(nt, p_par)

    # Overflow tiles (p*nk + k >= nt) clamp to the last block and are skipped in-kernel.
    in_map = lambda p, k: (0, jnp.minimum(p * nk + k, nt - 1))
    out_map = lambda p, k: (p, 0, 0)

    vmem_need = (3 * 2 * R * tile_hw * itemsize        # double-buffered input blocks
                 + 3 * 2 * R * _LANE * 4               # accumulator output blocks
                 + (2 << 20))                          # headroom
    vmem_limit = int(min(max(vmem_need, 32 << 20), 48 << 20))

    bytes_in = 3 * R * HW * itemsize
    bytes_out = 3 * p_par * R * _LANE * 4
    cost = pl.CostEstimate(flops=3 * R * HW, transcendentals=0,
                           bytes_accessed=bytes_in + bytes_out)

    kernel = functools.partial(_spatial_sum_kernel, nk, n_full, tail, tile_hw)
    psums = pl.pallas_call(
        kernel,
        out_shape=[jax.ShapeDtypeStruct((p_par, R, _LANE), jnp.float32)] * 3,
        grid_spec=pltpu.PrefetchScalarGridSpec(
            num_scalar_prefetch=0,
            grid=(p_par, nk),
            in_specs=[pl.BlockSpec((R, tile_hw), in_map),
                      pl.BlockSpec((R, tile_hw), in_map),
                      pl.BlockSpec((R, tile_hw), in_map)],
            out_specs=[pl.BlockSpec((None, R, _LANE), out_map),
                       pl.BlockSpec((None, R, _LANE), out_map),
                       pl.BlockSpec((None, R, _LANE), out_map)],
        ),
        compiler_params=pltpu.CompilerParams(
            dimension_semantics=("parallel", "arbitrary"),
            vmem_limit_bytes=vmem_limit),
        cost_estimate=cost,
    )(x1, x2, xr)
    p1s, p2s, prs = psums

    # Tiny (<= few KB) layout plumbing between kernels: fold the parallel-slice and
    # lane axes of the partial sums, stack the three images along sublane-aligned
    # row blocks for the single shared projection matmul in the epilogue.
    def pooled_bc(ps):                       # (P, R, 128) -> (B, C) spatial sums
        return jnp.sum(ps, axis=(0, 2)).reshape(B, C)

    bp = _round_up(B, _SUBLANE)
    pad_rows = ((0, bp - B), (0, 0))
    pooled_flat = jnp.concatenate(
        [jnp.pad(pooled_bc(ps), pad_rows) for ps in (p1s, p2s, prs)], axis=0)

    gt = jnp.pad(ground_truths.reshape(B, 1).astype(jnp.float32), pad_rows)
    a_arr = jnp.asarray(a_scalar, jnp.float32).reshape(1, 1)

    vmem = pl.BlockSpec(memory_space=pltpu.MemorySpace.VMEM)
    smem = pl.BlockSpec(memory_space=pltpu.MemorySpace.SMEM)

    out = pl.pallas_call(
        functools.partial(_epilogue_kernel, 1.0 / HW, 1e-8, B),
        out_shape=jax.ShapeDtypeStruct((1, 1), jnp.float32),
        in_specs=[smem, vmem, vmem, vmem],
        out_specs=vmem,
    )(a_arr, pooled_flat, w_feat.astype(jnp.float32), gt)
    return out[0, 0]


def _reference_forward(image1, image2, ref_image, ground_truths, w_feat, a_scalar):
    """Pure-JAX reference for correctness checking (same synthesized backbone)."""
    eps = 1e-8

    def feats(img):
        B, C, H, W = img.shape
        pooled = jnp.mean(img.reshape(B, C, H * W).astype(jnp.float32), axis=-1)
        return pooled @ w_feat

    def neg_dist(x, y):
        nx = jnp.maximum(jnp.linalg.norm(x, axis=-1), eps)
        ny = jnp.maximum(jnp.linalg.norm(y, axis=-1), eps)
        sim = jnp.sum(x * y, -1) / (nx * ny)
        return -(1.0 - jnp.clip(sim, -0.1, 1.0))

    f1, f2, fr = feats(image1), feats(image2), feats(ref_image)
    logits = jnp.exp(jnp.asarray(a_scalar, jnp.float32)) * (neg_dist(f1, fr) - neg_dist(f2, fr))
    t = jnp.round(ground_truths.astype(jnp.float32))
    loss = jnp.maximum(logits, 0.0) - logits * t + jnp.log1p(jnp.exp(-jnp.abs(logits)))
    return jnp.mean(loss)


if __name__ == "__main__":
    key = jax.random.PRNGKey(0)
    k1, k2, k3, k4, k5 = jax.random.split(key, 5)

    B, C, H, W = 2, 4, 16, 16

    image1 = jax.random.normal(k1, (B, C, H, W), jnp.float32)
    image2 = jax.random.normal(k2, (B, C, H, W), jnp.float32)
    ref_image = jax.random.normal(k3, (B, C, H, W), jnp.float32)
    ground_truths = jax.random.uniform(k4, (B,), jnp.float32)

    # Deterministic synthetic parameters (shapes from __init__ / vision_hidden_size).
    w_feat = jax.random.normal(k5, (C, VISION_HIDDEN_SIZE), jnp.float32) * 0.1
    a_scalar = 0.0                                            # self.a (exp(a) == 1.0)
    coper_w = jnp.ones((VISION_HIDDEN_SIZE,), jnp.float32)    # unused on bce/cosine path
    max_l2_norm = jnp.ones((1,), jnp.float32)                 # unused for cosine distance

    loss = deep_pairwise_measure_forward(image1, image2, ref_image,
                                         ground_truths, w_feat, a_scalar)
    loss = jax.block_until_ready(loss)

    ref = _reference_forward(image1, image2, ref_image, ground_truths, w_feat, a_scalar)
    assert jnp.abs(loss - ref) < 1e-4, (loss, ref)

    print("KERNEL_OK")
</pallas_src>

<mosaic_0001>
module attributes {stable_mosaic.version = 11 : i64} {
  func.func @_spatial_sum_kernel(%arg0: i32, %arg1: i32, %arg2: memref<8x256xf32, #tpu.memory_space<vmem>>, %arg3: memref<8x256xf32, #tpu.memory_space<vmem>>, %arg4: memref<8x256xf32, #tpu.memory_space<vmem>>, %arg5: memref<1x8x128xf32, #tpu.memory_space<vmem>>, %arg6: memref<1x8x128xf32, #tpu.memory_space<vmem>>, %arg7: memref<1x8x128xf32, #tpu.memory_space<vmem>>) attributes {dimension_semantics = [#tpu.dimension_semantics<parallel>, #tpu.dimension_semantics<arbitrary>], iteration_bounds = array<i64: 1, 1>, scalar_prefetch = 0 : i64, scratch_operands = 0 : i64, tpu.core_type = #tpu.core_type<tc>, window_params = [{transform_indices = @transform_0, window_bounds = array<i64: 8, 256>}, {transform_indices = @transform_1, window_bounds = array<i64: 8, 256>}, {transform_indices = @transform_2, window_bounds = array<i64: 8, 256>}, {transform_indices = @transform_3, window_bounds = array<i64: 1, 8, 128>}, {transform_indices = @transform_4, window_bounds = array<i64: 1, 8, 128>}, {transform_indices = @transform_5, window_bounds = array<i64: 1, 8, 128>}]} {
    %c1_i32 = arith.constant 1 : i32
    %0 = arith.muli %arg0, %c1_i32 : i32
    %1 = arith.addi %0, %arg1 : i32
    %c0_i32 = arith.constant 0 : i32
    %2 = arith.cmpi eq, %arg1, %c0_i32 : i32
    %3 = arith.extui %2 : i1 to i32
    %c0_i32_0 = arith.constant 0 : i32
    %4 = arith.cmpi ne, %3, %c0_i32_0 : i32
    scf.if %4 {
      %cst = arith.constant 0.000000e+00 : f32
      %8 = vector.broadcast %cst : f32 to vector<8x128xf32>
      %c0 = arith.constant 0 : index
      %c0_3 = arith.constant 0 : index
      %c0_4 = arith.constant 0 : index
      %9 = vector.load %arg5[%c0, %c0_3, %c0_4] : memref<1x8x128xf32, #tpu.memory_space<vmem>>, vector<1x8x128xf32>
      %10 = vector.shape_cast %9 : vector<1x8x128xf32> to vector<8x128xf32>
      %11 = vector.shape_cast %8 : vector<8x128xf32> to vector<1x8x128xf32>
      tpu.vector_store %arg5[%c0, %c0_3, %c0_4], %11 {strides = array<i32>} : memref<1x8x128xf32, #tpu.memory_space<vmem>>, vector<1x8x128xf32>,
      %cst_5 = arith.constant 0.000000e+00 : f32
      %12 = vector.broadcast %cst_5 : f32 to vector<8x128xf32>
      %c0_6 = arith.constant 0 : index
      %c0_7 = arith.constant 0 : index
      %c0_8 = arith.constant 0 : index
      %13 = vector.load %arg6[%c0_6, %c0_7, %c0_8] : memref<1x8x128xf32, #tpu.memory_space<vmem>>, vector<1x8x128xf32>
      %14 = vector.shape_cast %13 : vector<1x8x128xf32> to vector<8x128xf32>
      %15 = vector.shape_cast %12 : vector<8x128xf32> to vector<1x8x128xf32>
      tpu.vector_store %arg6[%c0_6, %c0_7, %c0_8], %15 {strides = array<i32>} : memref<1x8x128xf32, #tpu.memory_space<vmem>>, vector<1x8x128xf32>,
      %cst_9 = arith.constant 0.000000e+00 : f32
      %16 = vector.broadcast %cst_9 : f32 to vector<8x128xf32>
      %c0_10 = arith.constant 0 : index
      %c0_11 = arith.constant 0 : index
      %c0_12 = arith.constant 0 : index
      %17 = vector.load %arg7[%c0_10, %c0_11, %c0_12] : memref<1x8x128xf32, #tpu.memory_space<vmem>>, vector<1x8x128xf32>
      %18 = vector.shape_cast %17 : vector<1x8x128xf32> to vector<8x128xf32>
      %19 = vector.shape_cast %16 : vector<8x128xf32> to vector<1x8x128xf32>
      tpu.vector_store %arg7[%c0_10, %c0_11, %c0_12], %19 {strides = array<i32>} : memref<1x8x128xf32, #tpu.memory_space<vmem>>, vector<1x8x128xf32>,
    } else {
    }
    %c1_i32_1 = arith.constant 1 : i32
    %5 = arith.cmpi slt, %1, %c1_i32_1 : i32
    %6 = arith.extui %5 : i1 to i32
    %c0_i32_2 = arith.constant 0 : i32
    %7 = arith.cmpi ne, %6, %c0_i32_2 : i32
    scf.if %7 {
      %cst = arith.constant 0.000000e+00 : f32
      %8 = vector.broadcast %cst : f32 to vector<8x128xf32>
      %c0_i32_3 = arith.constant 0 : i32
      %c128_i32 = arith.constant 128 : i32
      %9 = arith.muli %c0_i32_3, %c128_i32 : i32
      %10 = tpu.assume_multiple %9, 128 : i32
      %c0 = arith.constant 0 : index
      %11 = arith.index_cast %10 : i32 to index
      %12 = vector.load %arg2[%c0, %11] : memref<8x256xf32, #tpu.memory_space<vmem>>, vector<8x128xf32>
      %13 = arith.addf %8, %12 : vector<8x128xf32>
      %c1_i32_4 = arith.constant 1 : i32
      %c128_i32_5 = arith.constant 128 : i32
      %14 = arith.muli %c1_i32_4, %c128_i32_5 : i32
      %15 = tpu.assume_multiple %14, 128 : i32
      %c0_6 = arith.constant 0 : index
      %16 = arith.index_cast %15 : i32 to index
      %17 = vector.load %arg2[%c0_6, %16] : memref<8x256xf32, #tpu.memory_space<vmem>>, vector<8x128xf32>
      %18 = arith.addf %13, %17 : vector<8x128xf32>
      %c2_i32 = arith.constant 2 : i32
      %c0_7 = arith.constant 0 : index
      %c0_8 = arith.constant 0 : index
      %c0_9 = arith.constant 0 : index
      %19 = vector.load %arg5[%c0_7, %c0_8, %c0_9] : memref<1x8x128xf32, #tpu.memory_space<vmem>>, vector<1x8x128xf32>
      %20 = vector.shape_cast %19 : vector<1x8x128xf32> to vector<8x128xf32>
      %21 = arith.addf %20, %18 : vector<8x128xf32>
      %c0_10 = arith.constant 0 : index
      %c0_11 = arith.constant 0 : index
      %c0_12 = arith.constant 0 : index
      %22 = vector.load %arg5[%c0_10, %c0_11, %c0_12] : memref<1x8x128xf32, #tpu.memory_space<vmem>>, vector<1x8x128xf32>
      %23 = vector.shape_cast %22 : vector<1x8x128xf32> to vector<8x128xf32>
      %24 = vector.shape_cast %21 : vector<8x128xf32> to vector<1x8x128xf32>
      tpu.vector_store %arg5[%c0_10, %c0_11, %c0_12], %24 {strides = array<i32>} : memref<1x8x128xf32, #tpu.memory_space<vmem>>, vector<1x8x128xf32>,
      %cst_13 = arith.constant 0.000000e+00 : f32
      %25 = vector.broadcast %cst_13 : f32 to vector<8x128xf32>
      %c0_i32_14 = arith.constant 0 : i32
      %c128_i32_15 = arith.constant 128 : i32
      %26 = arith.muli %c0_i32_14, %c128_i32_15 : i32
      %27 = tpu.assume_multiple %26, 128 : i32
      %c0_16 = arith.constant 0 : index
      %28 = arith.index_cast %27 : i32 to index
      %29 = vector.load %arg3[%c0_16, %28] : memref<8x256xf32, #tpu.memory_space<vmem>>, vector<8x128xf32>
      %30 = arith.addf %25, %29 : vector<8x128xf32>
      %c1_i32_17 = arith.constant 1 : i32
      %c128_i32_18 = arith.constant 128 : i32
      %31 = arith.muli %c1_i32_17, %c128_i32_18 : i32
      %32 = tpu.assume_multiple %31, 128 : i32
      %c0_19 = arith.constant 0 : index
      %33 = arith.index_cast %32 : i32 to index
      %34 = vector.load %arg3[%c0_19, %33] : memref<8x256xf32, #tpu.memory_space<vmem>>, vector<8x128xf32>
      %35 = arith.addf %30, %34 : vector<8x128xf32>
      %c2_i32_20 = arith.constant 2 : i32
      %c0_21 = arith.constant 0 : index
      %c0_22 = arith.constant 0 : index
      %c0_23 = arith.constant 0 : index
      %36 = vector.load %arg6[%c0_21, %c0_22, %c0_23] : memref<1x8x128xf32, #tpu.memory_space<vmem>>, vector<1x8x128xf32>
      %37 = vector.shape_cast %36 : vector<1x8x128xf32> to vector<8x128xf32>
      %38 = arith.addf %37, %35 : vector<8x128xf32>
      %c0_24 = arith.constant 0 : index
      %c0_25 = arith.constant 0 : index
      %c0_26 = arith.constant 0 : index
      %39 = vector.load %arg6[%c0_24, %c0_25, %c0_26] : memref<1x8x128xf32, #tpu.memory_space<vmem>>, vector<1x8x128xf32>
      %40 = vector.shape_cast %39 : vector<1x8x128xf32> to vector<8x128xf32>
      %41 = vector.shape_cast %38 : vector<8x128xf32> to vector<1x8x128xf32>
      tpu.vector_store %arg6[%c0_24, %c0_25, %c0_26], %41 {strides = array<i32>} : memref<1x8x128xf32, #tpu.memory_space<vmem>>, vector<1x8x128xf32>,
      %cst_27 = arith.constant 0.000000e+00 : f32
      %42 = vector.broadcast %cst_27 : f32 to vector<8x128xf32>
      %c0_i32_28 = arith.constant 0 : i32
      %c128_i32_29 = arith.constant 128 : i32
      %43 = arith.muli %c0_i32_28, %c128_i32_29 : i32
      %44 = tpu.assume_multiple %43, 128 : i32
      %c0_30 = arith.constant 0 : index
      %45 = arith.index_cast %44 : i32 to index
      %46 = vector.load %arg4[%c0_30, %45] : memref<8x256xf32, #tpu.memory_space<vmem>>, vector<8x128xf32>
      %47 = arith.addf %42, %46 : vector<8x128xf32>
      %c1_i32_31 = arith.constant 1 : i32
      %c128_i32_32 = arith.constant 128 : i32
      %48 = arith.muli %c1_i32_31, %c128_i32_32 : i32
      %49 = tpu.assume_multiple %48, 128 : i32
      %c0_33 = arith.constant 0 : index
      %50 = arith.index_cast %49 : i32 to index
      %51 = vector.load %arg4[%c0_33, %50] : memref<8x256xf32, #tpu.memory_space<vmem>>, vector<8x128xf32>
      %52 = arith.addf %47, %51 : vector<8x128xf32>
      %c2_i32_34 = arith.constant 2 : i32
      %c0_35 = arith.constant 0 : index
      %c0_36 = arith.constant 0 : index
      %c0_37 = arith.constant 0 : index
      %53 = vector.load %arg7[%c0_35, %c0_36, %c0_37] : memref<1x8x128xf32, #tpu.memory_space<vmem>>, vector<1x8x128xf32>
      %54 = vector.shape_cast %53 : vector<1x8x128xf32> to vector<8x128xf32>
      %55 = arith.addf %54, %52 : vector<8x128xf32>
      %c0_38 = arith.constant 0 : index
      %c0_39 = arith.constant 0 : index
      %c0_40 = arith.constant 0 : index
      %56 = vector.load %arg7[%c0_38, %c0_39, %c0_40] : memref<1x8x128xf32, #tpu.memory_space<vmem>>, vector<1x8x128xf32>
      %57 = vector.shape_cast %56 : vector<1x8x128xf32> to vector<8x128xf32>
      %58 = vector.shape_cast %55 : vector<8x128xf32> to vector<1x8x128xf32>
      tpu.vector_store %arg7[%c0_38, %c0_39, %c0_40], %58 {strides = array<i32>} : memref<1x8x128xf32, #tpu.memory_space<vmem>>, vector<1x8x128xf32>,
    } else {
    }
    return
  }
  func.func @transform_0(%arg0: i32, %arg1: i32) -> (i32, i32) {
    %c1_i32 = arith.constant 1 : i32
    %0 = arith.muli %arg0, %c1_i32 : i32
    %1 = arith.addi %0, %arg1 : i32
    %c0_i32 = arith.constant 0 : i32
    %2 = arith.minsi %1, %c0_i32 : i32
    %c0_i32_0 = arith.constant 0 : i32
    %c0_i32_1 = arith.constant 0 : i32
    return %c0_i32_0, %2 : i32, i32
  }
  func.func @transform_1(%arg0: i32, %arg1: i32) -> (i32, i32) {
    %c1_i32 = arith.constant 1 : i32
    %0 = arith.muli %arg0, %c1_i32 : i32
    %1 = arith.addi %0, %arg1 : i32
    %c0_i32 = arith.constant 0 : i32
    %2 = arith.minsi %1, %c0_i32 : i32
    %c0_i32_0 = arith.constant 0 : i32
    %c0_i32_1 = arith.constant 0 : i32
    return %c0_i32_0, %2 : i32, i32
  }
  func.func @transform_2(%arg0: i32, %arg1: i32) -> (i32, i32) {
    %c1_i32 = arith.constant 1 : i32
    %0 = arith.muli %arg0, %c1_i32 : i32
    %1 = arith.addi %0, %arg1 : i32
    %c0_i32 = arith.constant 0 : i32
    %2 = arith.minsi %1, %c0_i32 : i32
    %c0_i32_0 = arith.constant 0 : i32
    %c0_i32_1 = arith.constant 0 : i32
    return %c0_i32_0, %2 : i32, i32
  }
  func.func @transform_3(%arg0: i32, %arg1: i32) -> (i32, i32, i32) {
    %c0_i32 = arith.constant 0 : i32
    %c0_i32_0 = arith.constant 0 : i32
    %c0_i32_1 = arith.constant 0 : i32
    return %arg0, %c0_i32, %c0_i32_0 : i32, i32, i32
  }
  func.func @transform_4(%arg0: i32, %arg1: i32) -> (i32, i32, i32) {
    %c0_i32 = arith.constant 0 : i32
    %c0_i32_0 = arith.constant 0 : i32
    %c0_i32_1 = arith.constant 0 : i32
    return %arg0, %c0_i32, %c0_i32_0 : i32, i32, i32
  }
  func.func @transform_5(%arg0: i32, %arg1: i32) -> (i32, i32, i32) {
    %c0_i32 = arith.constant 0 : i32
    %c0_i32_0 = arith.constant 0 : i32
    %c0_i32_1 = arith.constant 0 : i32
    return %arg0, %c0_i32, %c0_i32_0 : i32, i32, i32
  }
}

</mosaic_0001>

<llo_original>
// kernel: tpu_custom_call.1
$region0: #{tpu_custom_call.1}
  #allocation0 [shape = 'u32[]', space=smem, size = 0x4, offset = 0x4, fixed_abs, tag = 'smem constant byte address 0x4 - core index']
  #allocation1 [shape = 'u32[72,128]{1,0:T(1,128)}', space=vmem, size = 0x9000, scoped, tag = 'internal scratch']
  %s0 = inlined_call_operand.hbm [shape: f32[8,256], index: 0, kind: input, shape index: {}]
  %s1 = inlined_call_operand.hbm [shape: f32[8,256], index: 1, kind: input, shape index: {}]
  %s2 = inlined_call_operand.hbm [shape: f32[8,256], index: 2, kind: input, shape index: {}]
  %s3 = inlined_call_operand.hbm [shape: f32[1,8,128], index: 3, kind: output, shape index: {0}]
  %s4 = inlined_call_operand.hbm [shape: f32[1,8,128], index: 4, kind: output, shape index: {1}]
  %s5 = inlined_call_operand.hbm [shape: f32[1,8,128], index: 5, kind: output, shape index: {2}]
  %6 = xla_tuple %s3, %s4, %s5
  %s7 = sld [smem:[#allocation0]]
  $region58: #{tpu_custom_call.1} parent=0
    _
  %s9 = ssub.s32 1, %s7
  %s10 = scalar_select 0, %s9, %s7
  $region1: #{tpu_custom_call.1} parent=0
    #allocation2 [shape = 'u8[8192]{0}', space=vmem, size = 0x2000, scoped, tag = 'input window, operand 0, single buffered']
    #allocation3 [shape = 's32[1]{0}', space=sflag, size = 0x4, scoped, tag = 'scoped memory for tpu_custom_call.1']
    #allocation4 [shape = 's32[1]{0}', space=sflag, size = 0x4, scoped, tag = 'scoped memory for tpu_custom_call.1']
    #allocation5 [shape = 'u8[8192]{0}', space=vmem, size = 0x2000, scoped, tag = 'input window, operand 1, single buffered']
    #allocation6 [shape = 's32[1]{0}', space=sflag, size = 0x4, scoped, tag = 'scoped memory for tpu_custom_call.1']
    #allocation7 [shape = 'u8[8192]{0}', space=vmem, size = 0x2000, scoped, tag = 'input window, operand 2, single buffered']
    #allocation8 [shape = 'u8[4096]{0}', space=vmem, size = 0x1000, scoped, tag = 'output window, operand 0, single buffered']
    #allocation9 [shape = 'u8[4096]{0}', space=vmem, size = 0x1000, scoped, tag = 'output window, operand 1, single buffered']
    #allocation10 [shape = 's32[1]{0}', space=sflag, size = 0x4, scoped, tag = 'scoped memory for tpu_custom_call.1']
    #allocation11 [shape = 'u8[4096]{0}', space=vmem, size = 0x1000, scoped, tag = 'output window, operand 2, single buffered']
    %11 = vsyncpa [#allocation3], 0
    %12 = vsyncpa [#allocation6], 0
    %13 = vsyncpa [#allocation4], 0
    %14 = vsyncpa [#allocation10], 0
    // Predicated region
    $region2: #{tpu_custom_call.1} parent=1 // pred_check
      _
    $region3: #{tpu_custom_call.1} parent=1 // pred_check_branch
      %16 = sbr.rel (0) target = $region5
    $region4: #{tpu_custom_call.1} parent=1 // pred_region
      %s17 = sadd.s32 0, 0
      %p18 = scmp.lt.s32.totalorder %s17, 0
      %s19 = scalar_select %p18, %s17, 0
      %s20 = smul.u32 2, %s19
      %22 = vsyncadd [#allocation3], 0
      %s23 = smul.addr %s20, 8
      %s24 = scalar_lea.hbm %s0, %s23
      %s26 = sshll.u32 %s24, 4
      %s27 = int_to_ptr.hbm [resolvable:$true] %s26
      %s28 = sshll.u32 [#allocation2], 4
      %s29 = int_to_ptr.vmem [resolvable:$true] %s28
      %31 = dma.hbm_to_vmem [thread:$0]  %s27, 256, %s29, [#allocation3]
    $region5: #{tpu_custom_call.1} parent=1 // pred_fallthru
      _
    // Predicated region
    $region6: #{tpu_custom_call.1} parent=1 // pred_check
      _
    $region7: #{tpu_custom_call.1} parent=1 // pred_check_branch
      %33 = sbr.rel (0) target = $region9
    $region8: #{tpu_custom_call.1} parent=1 // pred_region
      %s34 = sadd.s32 0, 0
      %p35 = scmp.lt.s32.totalorder %s34, 0
      %s36 = scalar_select %p35, %s34, 0
      %s37 = smul.u32 2, %s36
      %39 = vsyncadd [#allocation6], 0
      %s40 = smul.addr %s37, 8
      %s41 = scalar_lea.hbm %s1, %s40
      %s43 = sshll.u32 %s41, 4
      %s44 = int_to_ptr.hbm [resolvable:$true] %s43
      %s45 = sshll.u32 [#allocation5], 4
      %s46 = int_to_ptr.vmem [resolvable:$true] %s45
      %48 = dma.hbm_to_vmem [thread:$0]  %s44, 256, %s46, [#allocation6]
    $region9: #{tpu_custom_call.1} parent=1 // pred_fallthru
      _
    // Predicated region
    $region10: #{tpu_custom_call.1} parent=1 // pred_check
      _
    $region11: #{tpu_custom_call.1} parent=1 // pred_check_branch
      %50 = sbr.rel (0) target = $region13
    $region12: #{tpu_custom_call.1} parent=1 // pred_region
      %s51 = sadd.s32 0, 0
      %p52 = scmp.lt.s32.totalorder %s51, 0
      %s53 = scalar_select %p52, %s51, 0
      %s54 = smul.u32 2, %s53
      %56 = vsyncadd [#allocation6], 0
      %s57 = smul.addr %s54, 8
      %s58 = scalar_lea.hbm %s2, %s57
      %s60 = sshll.u32 %s58, 4
      %s61 = int_to_ptr.hbm [resolvable:$true] %s60
      %s62 = sshll.u32 [#allocation7], 4
      %s63 = int_to_ptr.vmem [resolvable:$true] %s62
      %65 = dma.hbm_to_vmem [thread:$0]  %s61, 256, %s63, [#allocation6]
    $region13: #{tpu_custom_call.1} parent=1 // pred_fallthru
      _
    // Predicated region
    $region14: #{tpu_custom_call.1} parent=1 // pred_check
      _
    $region15: #{tpu_custom_call.1} parent=1 // pred_check_branch
      %67 = sbr.rel (0) target = $region17
    $region16: #{tpu_custom_call.1} parent=1 // pred_region
      %69 = dma.done [#allocation3], 256
    $region17: #{tpu_custom_call.1} parent=1 // pred_fallthru
      _
    // Predicated region
    $region18: #{tpu_custom_call.1} parent=1 // pred_check
      _
    $region19: #{tpu_custom_call.1} parent=1 // pred_check_branch
      %71 = sbr.rel (0) target = $region21
    $region20: #{tpu_custom_call.1} parent=1 // pred_region
      %73 = dma.done [#allocation6], 256
    $region21: #{tpu_custom_call.1} parent=1 // pred_fallthru
      _
    // Predicated region
    $region22: #{tpu_custom_call.1} parent=1 // pred_check
      _
    $region23: #{tpu_custom_call.1} parent=1 // pred_check_branch
      %75 = sbr.rel (0) target = $region25
    $region24: #{tpu_custom_call.1} parent=1 // pred_region
      %77 = dma.done [#allocation6], 256
    $region25: #{tpu_custom_call.1} parent=1 // pred_fallthru
      _
    %s78 = sadd.s32 0, 0
    %p79 = scmp.lt.s32.totalorder %s78, 0
    %s80 = scalar_select %p79, %s78, 0
    %s81 = smul.u32 2, %s80
    %s82 = sadd.s32 0, 0
    %p83 = scmp.lt.s32.totalorder %s82, 0
    %s84 = scalar_select %p83, %s82, 0
    %s85 = smul.u32 2, %s84
    %s86 = sadd.s32 0, 0
    %p87 = scmp.lt.s32.totalorder %s86, 0
    %s88 = scalar_select %p87, %s86, 0
    %s89 = smul.u32 2, %s88
    %s90 = sadd.s32 0, 0
    %p91 = scmp.eq.s32.totalorder 0, 0
    // Predicated region
    $region26: #{tpu_custom_call.1} parent=1 // pred_check
      %p92 = pneg %p91
    $region27: #{tpu_custom_call.1} parent=1 // pred_check_branch
      %94 = sbr.rel (%p92) target = $region29
    $region28: #{tpu_custom_call.1} parent=1 // pred_region
      %95 = vst [vmem:[#allocation8] sm:$0xff] 0.0
      %96 = vst [vmem:[#allocation9] sm:$0xff] 0.0
      %97 = vst [vmem:[#allocation11] sm:$0xff] 0.0
    $region29: #{tpu_custom_call.1} parent=1 // pred_fallthru
      _
    %p98 = scmp.lt.s32.totalorder %s90, 1
    // Predicated region
    $region30: #{tpu_custom_call.1} parent=1 // pred_check
      %p99 = pneg %p98
    $region31: #{tpu_custom_call.1} parent=1 // pred_check_branch
      %101 = sbr.rel (%p99) target = $region33
    $region32: #{tpu_custom_call.1} parent=1 // pred_region
      %v102 = vld [vmem:[#allocation2] sm:$0xff]
      %v103 = vadd.f32 %v102, 0.0
      %s104 = scalar_lea.vmem [#allocation2], 8
      %v105 = vld [vmem:[%s104] sm:$0xff]
      %v106 = vadd.f32 %v103, %v105
      %v107 = vld [vmem:[#allocation8] sm:$0xff]
      %v108 = vadd.f32 %v107, %v106
      %109 = vst [vmem:[#allocation8] sm:$0xff] %v108
      %v110 = vld [vmem:[#allocation5] sm:$0xff]
      %v111 = vadd.f32 %v110, 0.0
      %s112 = scalar_lea.vmem [#allocation5], 8
      %v113 = vld [vmem:[%s112] sm:$0xff]
      %v114 = vadd.f32 %v111, %v113
      %v115 = vld [vmem:[#allocation9] sm:$0xff]
      %v116 = vadd.f32 %v115, %v114
      %117 = vst [vmem:[#allocation9] sm:$0xff] %v116
      %v118 = vld [vmem:[#allocation7] sm:$0xff]
      %v119 = vadd.f32 %v118, 0.0
      %s120 = scalar_lea.vmem [#allocation7], 8
      %v121 = vld [vmem:[%s120] sm:$0xff]
      %v122 = vadd.f32 %v119, %v121
      %v123 = vld [vmem:[#allocation11] sm:$0xff]
      %v124 = vadd.f32 %v123, %v122
      %125 = vst [vmem:[#allocation11] sm:$0xff] %v124
    $region33: #{tpu_custom_call.1} parent=1 // pred_fallthru
      _
    // Predicated region
    $region34: #{tpu_custom_call.1} parent=1 // pred_check
      _
    $region35: #{tpu_custom_call.1} parent=1 // pred_check_branch
      %127 = sbr.rel (0) target = $region37
    $region36: #{tpu_custom_call.1} parent=1 // pred_region
      %129 = vsyncadd [#allocation4], 0
      %s131 = sshll.u32 [#allocation8], 4
      %s132 = int_to_ptr.vmem [resolvable:$true] %s131
      %s133 = sshll.u32 %s3, 4
      %s134 = int_to_ptr.hbm [resolvable:$true] %s133
      %136 = dma.vmem_to_hbm [thread:$0]  %s132, 128, %s134, [#allocation4]
    $region37: #{tpu_custom_call.1} parent=1 // pred_fallthru
      _
    // Predicated region
    $region38: #{tpu_custom_call.1} parent=1 // pred_check
      _
    $region39: #{tpu_custom_call.1} parent=1 // pred_check_branch
      %138 = sbr.rel (0) target = $region41
    $region40: #{tpu_custom_call.1} parent=1 // pred_region
      %140 = vsyncadd [#allocation10], 0
      %s142 = sshll.u32 [#allocation9], 4
      %s143 = int_to_ptr.vmem [resolvable:$true] %s142
      %s144 = sshll.u32 %s4, 4
      %s145 = int_to_ptr.hbm [resolvable:$true] %s144
      %147 = dma.vmem_to_hbm [thread:$0]  %s143, 128, %s145, [#allocation10]
    $region41: #{tpu_custom_call.1} parent=1 // pred_fallthru
      _
    // Predicated region
    $region42: #{tpu_custom_call.1} parent=1 // pred_check
      _
    $region43: #{tpu_custom_call.1} parent=1 // pred_check_branch
      %149 = sbr.rel (0) target = $region45
    $region44: #{tpu_custom_call.1} parent=1 // pred_region
      %151 = vsyncadd [#allocation10], 0
      %s153 = sshll.u32 [#allocation11], 4
      %s154 = int_to_ptr.vmem [resolvable:$true] %s153
      %s155 = sshll.u32 %s5, 4
      %s156 = int_to_ptr.hbm [resolvable:$true] %s155
      %158 = dma.vmem_to_hbm [thread:$0]  %s154, 128, %s156, [#allocation10]
    $region45: #{tpu_custom_call.1} parent=1 // pred_fallthru
      _
    // Predicated region
    $region46: #{tpu_custom_call.1} parent=1 // pred_check
      _
    $region47: #{tpu_custom_call.1} parent=1 // pred_check_branch
      %160 = sbr.rel (0) target = $region49
    $region48: #{tpu_custom_call.1} parent=1 // pred_region
      %162 = dma.done [#allocation4], 128
    $region49: #{tpu_custom_call.1} parent=1 // pred_fallthru
      _
    // Predicated region
    $region50: #{tpu_custom_call.1} parent=1 // pred_check
      _
    $region51: #{tpu_custom_call.1} parent=1 // pred_check_branch
      %164 = sbr.rel (0) target = $region53
    $region52: #{tpu_custom_call.1} parent=1 // pred_region
      %166 = dma.done [#allocation10], 128
    $region53: #{tpu_custom_call.1} parent=1 // pred_fallthru
      _
    // Predicated region
    $region54: #{tpu_custom_call.1} parent=1 // pred_check
      _
    $region55: #{tpu_custom_call.1} parent=1 // pred_check_branch
      %168 = sbr.rel (0) target = $region57
    $region56: #{tpu_custom_call.1} parent=1 // pred_region
      %170 = dma.done [#allocation10], 128
    $region57: #{tpu_custom_call.1} parent=1 // pred_fallthru
      _
    %171 = vsyncpa [#allocation3], 1
    %172 = vsyncpa [#allocation6], 1
    %173 = vsyncpa [#allocation4], 1
    %174 = vsyncpa [#allocation10], 1

</llo_original>
